<compile_context>
chip_gen: v7x
topology: tpu7x:2x2x1
jax: 0.10.0
libtpu: 0.0.40
codegen_flags: <defaults>
</compile_context>

<pallas_src>
import jax
import jax.numpy as jnp
from jax.experimental import pallas as pl
from jax.experimental.pallas import tpu as pltpu


# ---------------------------------------------------------------------------
# Kernels
# ---------------------------------------------------------------------------

def _dot_score_kernel(hs_ref, ht_ref, out_ref):
    # out[b, s] = sum_h hs[b, s, h] * ht[s, h]
    # Multiply in native dtype; accumulate the H-reduction in f32 without
    # materializing an f32 copy of the [TB, TS, H] tile.
    prod = hs_ref[...] * ht_ref[...][None, :, :]                    # [TB, TS, H]
    out = jnp.sum(prod, axis=-1, dtype=jnp.float32)                 # [TB, TS]
    out_ref[...] = out.astype(out_ref.dtype)


def _general_score_kernel(hs_ref, htp_ref, bias_ref, out_ref):
    # out[b, s] = sum_h hs[b, s, h] * ht_proj[s, h] + bias[s]
    prod = hs_ref[...] * htp_ref[...][None, :, :]                   # [TB, TS, H]
    acc = jnp.sum(prod, axis=-1, dtype=jnp.float32)                 # [TB, TS]
    out = acc + bias_ref[...]                                       # bias [1, TS] (f32)
    out_ref[...] = out.astype(out_ref.dtype)


def _project_ht_kernel(ht_ref, w_ref, b_ref, htp_ref, bias_ref):
    # One-time precompute for the 'general' strategy (tiled over S):
    #   ht_proj[s, h] = sum_k h_t[s, k] * W[k, h]   (= h_t @ W; W is PyTorch [out,in])
    #   bias[0, s]    = sum_k b[k] * h_t[s, k]      (produced directly as [1, TSp])
    # Native-dtype inputs + preferred_element_type=f32 -> MXU fast path, no pre-cast.
    ht = ht_ref[...]                                                # [TSp, H]
    htp = jnp.dot(ht, w_ref[...], preferred_element_type=jnp.float32)
    htp_ref[...] = htp.astype(htp_ref.dtype)
    bias = jax.lax.dot_general(
        b_ref[...], ht,
        dimension_numbers=(((1,), (1,)), ((), ())),
        preferred_element_type=jnp.float32)                         # [1, TSp]
    bias_ref[...] = bias


# ---------------------------------------------------------------------------
# Tiling helpers
# ---------------------------------------------------------------------------

def _vmem_budget_bytes():
    """Per-step input-tile budget (h_s tile + resident h_t tile), per generation."""
    try:
        kind = jax.devices()[0].device_kind.lower()
    except Exception:
        return 4 << 20
    if "v7" in kind:
        return 6 << 20      # big enough to amortize step overhead at 3.2 TB/s
    if "v6" in kind:
        return 8 << 20      # plateau region of the mem-bound tiling curve
    if "v5" in kind:
        return 3 << 20      # 16 MiB scoped-VMEM default; ~0.8 TB/s hides overhead
    return 4 << 20


def _pick_tiles(B, S, H, itemsize, budget_bytes):
    """Pick (TB, TS) so (TB+1)*TS*H*itemsize <= budget (h_s tile + resident h_t tile).

    Output-block constraints: TB is B or a multiple of 8 (sublane); TS is S or a
    multiple of 128 (lane).  TB is chosen first, then TS from the remaining budget,
    so the budget really bounds the final tile (fixes the old 8x overshoot).
    """
    row = H * itemsize
    TB = B if B <= 8 else 8
    TS = budget_bytes // ((TB + 1) * row)
    if TS >= S:
        TS = S
        if B > 8:
            # leftover budget -> grow the batch tile (multiple of 8, capped at B)
            tb = budget_bytes // (S * row) - 1
            tb = (tb // 8) * 8
            TB = min(B, max(8, tb))
    else:
        TS = max(128, (TS // 128) * 128)
        TS = min(TS, S)
    return TB, TS


# ---------------------------------------------------------------------------
# Wrappers
# ---------------------------------------------------------------------------

def _tiled_row_dot(h_s, ht_eff, bias=None):
    """scores[b, s] = sum_h h_s[b,s,h] * ht_eff[s,h] (+ bias[0,s])."""
    B, S, H = h_s.shape
    itemsize = jnp.dtype(h_s.dtype).itemsize
    TB, TS = _pick_tiles(B, S, H, itemsize, _vmem_budget_bytes())

    # Grid: seq-tiles OUTER, batch-tiles INNER (fastest).  h_t / bias block indices
    # depend only on the outer axis, so they stay resident across the inner loop.
    grid = (pl.cdiv(S, TS), pl.cdiv(B, TB))

    hs_spec = pl.BlockSpec((TB, TS, H), lambda s, b: (b, s, 0))
    ht_spec = pl.BlockSpec((TS, H), lambda s, b: (s, 0))
    out_spec = pl.BlockSpec((TB, TS), lambda s, b: (b, s))
    out_shape = jax.ShapeDtypeStruct((B, S), h_s.dtype)
    cp = pltpu.CompilerParams(dimension_semantics=("parallel", "parallel"))

    # TODO(synk): if production H is not a multiple of 128, pad H wrapper-side to
    # avoid lane-padding waste in every DMA row (not needed for the self-test).

    if bias is None:
        return pl.pallas_call(
            _dot_score_kernel,
            out_shape=out_shape,
            grid=grid,
            in_specs=[hs_spec, ht_spec],
            out_specs=out_spec,
            compiler_params=cp,
        )(h_s, ht_eff)

    bias_spec = pl.BlockSpec((1, TS), lambda s, b: (0, s))
    return pl.pallas_call(
        _general_score_kernel,
        out_shape=out_shape,
        grid=grid,
        in_specs=[hs_spec, ht_spec, bias_spec],
        out_specs=out_spec,
        compiler_params=cp,
    )(h_s, ht_eff, bias)


def _project_ht(h_t, W_a, b_a, out_dtype):
    """ht_proj = h_t @ W_a ([S,H]),  bias = h_t @ b_a ([1,S]) — tiled over S."""
    S, H = h_t.shape
    itemsize = jnp.dtype(h_t.dtype).itemsize
    w_bytes = H * H * jnp.dtype(W_a.dtype).itemsize

    if w_bytes > (4 << 20):
        # TODO(synk): for very large hidden sizes W_a (plus its pipeline buffers)
        # does not fit comfortably in VMEM (esp. v7x's 64 MiB); this one-shot
        # projection is launch-once, so plain XLA is the right fallback.
        htp = jnp.dot(h_t, W_a, preferred_element_type=jnp.float32).astype(out_dtype)
        bias = jnp.dot(h_t, b_a, preferred_element_type=jnp.float32).reshape(1, S)
        return htp, bias

    # Seq tile for the projection (~1 MiB of h_t per step; S or a multiple of 128
    # so the (1, TSp) bias block stays lane-legal).
    if S * H * itemsize <= (1 << 20):
        TSp = S
    else:
        TSp = max(128, ((1 << 20) // (H * itemsize) // 128) * 128)
        TSp = min(TSp, S)

    grid = (pl.cdiv(S, TSp),)
    return pl.pallas_call(
        _project_ht_kernel,
        out_shape=(jax.ShapeDtypeStruct((S, H), out_dtype),
                   jax.ShapeDtypeStruct((1, S), jnp.float32)),
        grid=grid,
        in_specs=[pl.BlockSpec((TSp, H), lambda i: (i, 0)),
                  pl.BlockSpec((H, H), lambda i: (0, 0)),
                  pl.BlockSpec((1, H), lambda i: (0, 0))],
        out_specs=(pl.BlockSpec((TSp, H), lambda i: (i, 0)),
                   pl.BlockSpec((1, TSp), lambda i: (0, i))),
        compiler_params=pltpu.CompilerParams(dimension_semantics=("arbitrary",)),
    )(h_t, W_a, b_a.reshape(1, H))   # bias reshaped wrapper-side, stays 2-D in VMEM


def attention_scorer(h_s, h_t, scorer_strategy, W_a=None, b_a=None):
    """Pallas implementation of AttentionScorer.forward.

    h_s: [B, S, H], h_t: [S, H]  ->  scores [B, S]
    """
    if scorer_strategy == "dot":
        return _tiled_row_dot(h_s, h_t)
    elif scorer_strategy == "general":
        assert W_a is not None and b_a is not None
        ht_proj, bias = _project_ht(h_t, W_a, b_a, out_dtype=h_s.dtype)
        return _tiled_row_dot(h_s, ht_proj, bias)
    else:
        raise Exception(f"Strategy {scorer_strategy} not supported!")
    # TODO(synk): the 'concat' strategy is not implemented in the PyTorch module's
    # forward either, so it is intentionally omitted here.


# ---------------------------------------------------------------------------
# Reference + self-test
# ---------------------------------------------------------------------------

def _reference(h_s, h_t, scorer_strategy, W_a=None, b_a=None):
    """Literal jnp transcription of the PyTorch forward (tensordot + diagonal)."""
    x = h_s
    if scorer_strategy == "general":
        x = jnp.dot(h_s, W_a.T) + b_a
    full_dot = jnp.tensordot(x, h_t, axes=([2], [1]))        # [B, S, S]
    return jnp.diagonal(full_dot, axis1=1, axis2=2)          # [B, S]


if __name__ == "__main__":
    B, S, H = 2, 8, 32
    key = jax.random.PRNGKey(0)
    k_hs, k_ht, k_w, k_b = jax.random.split(key, 4)

    h_s = jax.random.normal(k_hs, (B, S, H), dtype=jnp.float32)
    h_t = jax.random.normal(k_ht, (S, H), dtype=jnp.float32)

    # Deterministic Linear(H, H) params (PyTorch-style uniform(-1/sqrt(H), 1/sqrt(H))).
    bound = 1.0 / (H ** 0.5)
    W_a = jax.random.uniform(k_w, (H, H), jnp.float32, -bound, bound)
    b_a = jax.random.uniform(k_b, (H,), jnp.float32, -bound, bound)

    # 'dot' strategy
    out_dot = jax.block_until_ready(attention_scorer(h_s, h_t, "dot"))
    ref_dot = _reference(h_s, h_t, "dot")
    assert out_dot.shape == (B, S)
    assert jnp.allclose(out_dot, ref_dot, atol=1e-4, rtol=1e-4)

    # 'general' strategy (algebraically restructured; same result up to f32 sum order)
    out_gen = jax.block_until_ready(
        attention_scorer(h_s, h_t, "general", W_a=W_a, b_a=b_a))
    ref_gen = _reference(h_s, h_t, "general", W_a=W_a, b_a=b_a)
    assert out_gen.shape == (B, S)
    assert jnp.allclose(out_gen, ref_gen, atol=1e-4, rtol=1e-4)

    print("KERNEL_OK")
</pallas_src>

<mosaic_0001>
module attributes {stable_mosaic.version = 11 : i64} {
  func.func @_dot_score_kernel(%arg0: i32, %arg1: i32, %arg2: memref<2x8x32xf32, #tpu.memory_space<vmem>>, %arg3: memref<8x32xf32, #tpu.memory_space<vmem>>, %arg4: memref<2x8xf32, #tpu.memory_space<vmem>>) attributes {dimension_semantics = [#tpu.dimension_semantics<parallel>, #tpu.dimension_semantics<parallel>], iteration_bounds = array<i64: 1, 1>, scalar_prefetch = 0 : i64, scratch_operands = 0 : i64, tpu.core_type = #tpu.core_type<tc>, window_params = [{transform_indices = @transform_0, window_bounds = array<i64: 2, 8, 32>}, {transform_indices = @transform_1, window_bounds = array<i64: 8, 32>}, {transform_indices = @transform_2, window_bounds = array<i64: 2, 8>}]} {
    %c0 = arith.constant 0 : index
    %c0_0 = arith.constant 0 : index
    %c0_1 = arith.constant 0 : index
    %0 = vector.load %arg2[%c0, %c0_0, %c0_1] : memref<2x8x32xf32, #tpu.memory_space<vmem>>, vector<2x8x32xf32>
    %c0_2 = arith.constant 0 : index
    %c0_3 = arith.constant 0 : index
    %1 = vector.load %arg3[%c0_2, %c0_3] : memref<8x32xf32, #tpu.memory_space<vmem>>, vector<8x32xf32>
    %2 = vector.shape_cast %1 : vector<8x32xf32> to vector<1x8x32xf32>
    %3 = vector.broadcast %2 : vector<1x8x32xf32> to vector<2x8x32xf32>
    %4 = arith.mulf %0, %3 : vector<2x8x32xf32>
    %cst = arith.constant dense<0.000000e+00> : vector<2x8xf32>
    %5 = vector.multi_reduction <add>, %4, %cst [2] : vector<2x8x32xf32> to vector<2x8xf32>
    %c0_4 = arith.constant 0 : index
    %c0_5 = arith.constant 0 : index
    %6 = vector.load %arg4[%c0_4, %c0_5] : memref<2x8xf32, #tpu.memory_space<vmem>>, vector<2x8xf32>
    tpu.vector_store %arg4[%c0_4, %c0_5], %5 {strides = array<i32>} : memref<2x8xf32, #tpu.memory_space<vmem>>, vector<2x8xf32>,
    return
  }
  func.func @transform_0(%arg0: i32, %arg1: i32) -> (i32, i32, i32) {
    %c0_i32 = arith.constant 0 : i32
    %c0_i32_0 = arith.constant 0 : i32
    return %arg1, %arg0, %c0_i32 : i32, i32, i32
  }
  func.func @transform_1(%arg0: i32, %arg1: i32) -> (i32, i32) {
    %c0_i32 = arith.constant 0 : i32
    %c0_i32_0 = arith.constant 0 : i32
    return %arg0, %c0_i32 : i32, i32
  }
  func.func @transform_2(%arg0: i32, %arg1: i32) -> (i32, i32) {
    %c0_i32 = arith.constant 0 : i32
    return %arg1, %arg0 : i32, i32
  }
}

</mosaic_0001>

<llo_original>
// kernel: tpu_custom_call.1
$region0: #{tpu_custom_call.1}
  #allocation0 [shape = 'u32[]', space=smem, size = 0x4, offset = 0x4, fixed_abs, tag = 'smem constant byte address 0x4 - core index']
  #allocation1 [shape = 'u32[144,128]{1,0:T(1,128)}', space=vmem, size = 0x12000, scoped, tag = 'internal scratch']
  %s0 = inlined_call_operand.hbm [shape: f32[2,8,32], index: 0, kind: input, shape index: {}]
  %s1 = inlined_call_operand.hbm [shape: f32[8,32], index: 1, kind: input, shape index: {}]
  %s2 = inlined_call_operand.hbm [shape: f32[2,8], index: 2, kind: output, shape index: {}]
  %s3 = sld [smem:[#allocation0]]
  $region26: #{tpu_custom_call.1} parent=0
    _
  %s5 = ssub.s32 1, %s3
  %s6 = scalar_select 0, %s5, %s3
  $region1: #{tpu_custom_call.1} parent=0
    #allocation2 [shape = 'u8[8192]{0}', space=vmem, size = 0x2000, scoped, tag = 'input window, operand 0, single buffered']
    #allocation3 [shape = 's32[1]{0}', space=sflag, size = 0x4, scoped, tag = 'scoped memory for tpu_custom_call.1']
    #allocation4 [shape = 's32[1]{0}', space=sflag, size = 0x4, scoped, tag = 'scoped memory for tpu_custom_call.1']
    #allocation5 [shape = 'u8[4096]{0}', space=vmem, size = 0x1000, scoped, tag = 'input window, operand 1, single buffered']
    #allocation6 [shape = 's32[1]{0}', space=sflag, size = 0x4, scoped, tag = 'scoped memory for tpu_custom_call.1']
    #allocation7 [shape = 'u8[1024]{0}', space=vmem, size = 0x400, scoped, tag = 'output window, operand 0, single buffered']
    %7 = vsyncpa [#allocation3], 0
    %8 = vsyncpa [#allocation6], 0
    %9 = vsyncpa [#allocation4], 0
    // Predicated region
    $region2: #{tpu_custom_call.1} parent=1 // pred_check
      _
    $region3: #{tpu_custom_call.1} parent=1 // pred_check_branch
      %11 = sbr.rel (0) target = $region5
    $region4: #{tpu_custom_call.1} parent=1 // pred_region
      %s13 = ssub.s32 256, 256
      %14 = vsyncadd [#allocation3], %s13
      %s15 = sshll.u32 [#allocation2], 4
      %s16 = int_to_ptr.vmem [resolvable:$true] %s15
      %21 = dma.hbm_to_vmem [thread:$0]  %s0, 256, %s16, [#allocation3], 128, 128, 8
    $region5: #{tpu_custom_call.1} parent=1 // pred_fallthru
      _
    // Predicated region
    $region6: #{tpu_custom_call.1} parent=1 // pred_check
      _
    $region7: #{tpu_custom_call.1} parent=1 // pred_check_branch
      %23 = sbr.rel (0) target = $region9
    $region8: #{tpu_custom_call.1} parent=1 // pred_region
      %s25 = ssub.s32 128, 128
      %26 = vsyncadd [#allocation6], %s25
      %s28 = sshll.u32 [#allocation5], 4
      %s29 = int_to_ptr.vmem [resolvable:$true] %s28
      %31 = dma.hbm_to_vmem [thread:$0]  %s1, 128, %s29, [#allocation6]
    $region9: #{tpu_custom_call.1} parent=1 // pred_fallthru
      _
    // Predicated region
    $region10: #{tpu_custom_call.1} parent=1 // pred_check
      _
    $region11: #{tpu_custom_call.1} parent=1 // pred_check_branch
      %33 = sbr.rel (0) target = $region13
    $region12: #{tpu_custom_call.1} parent=1 // pred_region
      %34 = dma.done [#allocation3], 256
    $region13: #{tpu_custom_call.1} parent=1 // pred_fallthru
      _
    // Predicated region
    $region14: #{tpu_custom_call.1} parent=1 // pred_check
      _
    $region15: #{tpu_custom_call.1} parent=1 // pred_check_branch
      %36 = sbr.rel (0) target = $region17
    $region16: #{tpu_custom_call.1} parent=1 // pred_region
      %37 = dma.done [#allocation6], 128
    $region17: #{tpu_custom_call.1} parent=1 // pred_fallthru
      _
    %v38 = vld [vmem:[#allocation2] sm:$0xff]
    %v39 = vld [vmem:[#allocation2 + $0x8] sm:$0xff]
    %v40 = vld [vmem:[#allocation5] sm:$0xff]
    %v41 = vmul.f32 %v38, %v40
    %v42 = vmul.f32 %v39, %v40
    %vm43 = vcmask 261120
    %v44 = vsel %vm43, %v41, 0.0
    %45 = vadd.xlane.f32.xlu0 %v44
    %v46 = vpop.xlane.xlu0 %45
    %v47 = vsel %vm43, %v42, 0.0
    %48 = vadd.xlane.f32.xlu0 %v47
    %v49 = vpop.xlane.xlu0 %48
    %v52 = vlaneseq
    %v53 = vand.u32 %v52, 127
    %v54 = vlaneseq
    %v55 = vshrl.u32 %v54, 7
    %v56 = vsub.s32 %v53, %v55
    %v57 = vrot.slane %v46, %v56
    %v58 = vlaneseq
    %v59 = vshrl.u32 %v58, 7
    %v60 = vsub.s32 %v53, %v59
    %v61 = vrot.slane %v49, %v60
    %vm62 = vcmask 1041409
    %v63 = vsel %vm62, %v61, %v57
    %vm65 = vcmask 58368
    %66 = vst.msk [vmem:[#allocation7] sm:$0x3] %vm65, %v63
    // Predicated region
    $region18: #{tpu_custom_call.1} parent=1 // pred_check
      _
    $region19: #{tpu_custom_call.1} parent=1 // pred_check_branch
      %68 = sbr.rel (0) target = $region21
    $region20: #{tpu_custom_call.1} parent=1 // pred_region
      %s70 = ssub.s32 32, 32
      %71 = vsyncadd [#allocation4], %s70
      %s73 = sshll.u32 [#allocation7], 4
      %s74 = int_to_ptr.vmem [resolvable:$true] %s73
      %76 = dma.vmem_to_hbm [thread:$0]  %s74, 32, %s2, [#allocation4]
    $region21: #{tpu_custom_call.1} parent=1 // pred_fallthru
      _
    // Predicated region
    $region22: #{tpu_custom_call.1} parent=1 // pred_check
      _
    $region23: #{tpu_custom_call.1} parent=1 // pred_check_branch
      %78 = sbr.rel (0) target = $region25
    $region24: #{tpu_custom_call.1} parent=1 // pred_region
      %79 = dma.done [#allocation4], 32
    $region25: #{tpu_custom_call.1} parent=1 // pred_fallthru
      _
    %80 = vsyncpa [#allocation3], 1
    %81 = vsyncpa [#allocation6], 1
    %82 = vsyncpa [#allocation4], 1

</llo_original>
